<compile_context>
chip_gen: v7x
topology: tpu7x:2x2x1
jax: 0.10.0
libtpu: 0.0.40
codegen_flags: <defaults>
</compile_context>

<pallas_src>
import jax
import jax.numpy as jnp
from jax.experimental import pallas as pl
from jax.experimental.pallas import tpu as pltpu

_MIB = 1024 * 1024


def _locked_dropout_kernel(mask_ref, x_ref, o_ref):
    """o = x * mask for one (tile_t, tile_bh) block.

    mask_ref is (1, tile_bh) and already scaled by 1/keep_prob; it broadcasts
    over the tile_t rows, so every time step sees the identical mask.
    """
    o_ref[...] = x_ref[...] * mask_ref[...]


def _sublane_packing(dtype) -> int:
    """Rows per packed sublane tile: 8 for 32-bit, 16 for bf16, 32 for int8/fp8."""
    return max(8, 32 // jnp.dtype(dtype).itemsize)


def _vmem_capacity_bytes() -> int:
    try:
        cap = getattr(pltpu.get_tpu_info(), "vmem_capacity_bytes", None)
        if cap:
            return int(cap)
    except Exception:
        pass
    return 64 * _MIB  # conservative fallback: v7x per-TensorCore VMEM


def _tiling_policy():
    """Generation-aware (per-block target bytes, scoped-VMEM limit bytes)."""
    cap = _vmem_capacity_bytes()
    if cap >= 128 * _MIB:            # v5e / v6e: 128 MiB VMEM
        return 8 * _MIB, 64 * _MIB
    return 6 * _MIB, 48 * _MIB       # v7x (64 MiB per TC) or unknown


def _choose_tiles(T, BH, itemsize, packing, target_bytes):
    """Pick (tile_t, tile_bh) blocks ~target_bytes, lane-dense, packing-aligned."""
    # Lane (last-dim) tile: keep the full BH whenever a minimum-height block
    # fits the target, or when BH is not 128-aligned (a full-extent block dim
    # is always legal).  Otherwise split BH into 128-multiple tiles.
    if packing * BH * itemsize <= target_bytes or BH % 128 != 0:
        tile_bh = BH
    else:
        tile_bh = max(128, ((target_bytes // (packing * itemsize)) // 128) * 128)
        tile_bh = min(tile_bh, BH)
    bh_tiles = pl.cdiv(BH, tile_bh)

    # Sublane (time) tile: biggest packing-multiple keeping a block <= target,
    # or the full T extent if everything fits.
    row_bytes = tile_bh * itemsize
    if T * row_bytes <= target_bytes:
        tile_t = T
    else:
        tile_t = max(packing, ((target_bytes // row_bytes) // packing) * packing)
        tile_t = min(tile_t, T)

    # Megacore: v7x shards "parallel" grid axes across 2 TensorCores; aim for
    # at least 4 total grid steps when T allows it.
    while tile_t > packing and pl.cdiv(T, tile_t) * bh_tiles < 4:
        new_t = max(packing, ((tile_t // 2) // packing) * packing)
        if new_t == tile_t:
            break
        tile_t = new_t

    return tile_t, tile_bh


def locked_dropout(x, *, dropout: float = 0.5, key=None, training: bool = True):
    """Pallas LockedDropout forward.  x: (T, B, H) = (seq, batch, hidden)."""
    if (not training) or dropout == 0.0:
        return x
    if dropout >= 1.0:
        return jnp.zeros_like(x)
    if key is None:
        # A fixed default key would silently reuse the identical mask on every
        # call, which is statistically wrong for training.
        raise ValueError("locked_dropout requires an explicit PRNG key when training.")

    T, B, H = x.shape
    keep_prob = 1.0 - float(dropout)
    itemsize = jnp.dtype(x.dtype).itemsize

    # One Bernoulli(keep_prob) mask over (B, H), scaled by 1/keep_prob, reused
    # for every time step (the "locked" part).
    mask = jax.random.bernoulli(key, keep_prob, (B, H)).astype(x.dtype)
    mask = mask * jnp.asarray(1.0 / keep_prob, dtype=x.dtype)

    # Lane-dense 2D views.  Reshapes of contiguous arrays are free: no padding
    # and no output slice, so the kernel moves exactly 1x(read)+1x(write) of x.
    BH = B * H
    x2 = x.reshape(T, BH)
    m2 = mask.reshape(1, BH)

    packing = _sublane_packing(x.dtype)
    target_bytes, vmem_limit = _tiling_policy()
    tile_t, tile_bh = _choose_tiles(T, BH, itemsize, packing, target_bytes)
    grid = (pl.cdiv(T, tile_t), pl.cdiv(BH, tile_bh))

    cost = pl.CostEstimate(
        flops=T * BH,
        transcendentals=0,
        bytes_accessed=(2 * T * BH + BH) * itemsize,
    )

    out2 = pl.pallas_call(
        _locked_dropout_kernel,
        out_shape=jax.ShapeDtypeStruct((T, BH), x.dtype),
        grid=grid,
        in_specs=[
            pl.BlockSpec((1, tile_bh), lambda t, c: (0, c)),       # mask: reused across t
            pl.BlockSpec((tile_t, tile_bh), lambda t, c: (t, c)),  # x tile
        ],
        out_specs=pl.BlockSpec((tile_t, tile_bh), lambda t, c: (t, c)),
        compiler_params=pltpu.CompilerParams(
            dimension_semantics=("parallel", "parallel"),
            vmem_limit_bytes=vmem_limit,
        ),
        cost_estimate=cost,
    )(m2, x2)

    return out2.reshape(T, B, H)


if __name__ == "__main__":
    key = jax.random.PRNGKey(0)
    kx, kmask = jax.random.split(key)

    T, B, H = 8, 4, 32
    x = jax.random.normal(kx, (T, B, H), dtype=jnp.float32)

    out = locked_dropout(x, dropout=0.5, key=kmask, training=True)
    out = jax.block_until_ready(out)

    # --- sanity checks (locked-dropout semantics) ---
    assert out.shape == x.shape and out.dtype == x.dtype
    ratio = out / jnp.where(x == 0.0, 1.0, x)          # effective per-element mask
    same_across_t = jnp.allclose(ratio, ratio[0:1], atol=1e-5)
    vals_ok = jnp.all(
        jnp.isclose(ratio, 0.0, atol=1e-5) | jnp.isclose(ratio, 2.0, atol=1e-5)
    )
    assert bool(same_across_t), "mask not locked across time axis"
    assert bool(vals_ok), "mask values are not {0, 1/(1-p)}"

    # Exact comparison against a pure-JAX reference using the same mask.
    m_ref = jax.random.bernoulli(kmask, 0.5, (B, H)).astype(x.dtype) * 2.0
    ref = x * m_ref[None, :, :]
    assert bool(jnp.allclose(out, ref, atol=1e-6)), "mismatch vs pure-JAX reference"

    # eval mode / dropout=0 passthrough, dropout=1 guard.
    assert bool(jnp.array_equal(locked_dropout(x, dropout=0.5, training=False), x))
    assert bool(jnp.array_equal(locked_dropout(x, dropout=0.0, training=True), x))
    assert bool(
        jnp.array_equal(locked_dropout(x, dropout=1.0, training=True), jnp.zeros_like(x))
    )

    # A bf16, non-128-aligned (B*H) case exercising the multi-step grid path.
    T2, B2, H2 = 48, 6, 100   # BH=600 (full-extent lane block), bf16 packing=16
    xb = jax.random.normal(kx, (T2, B2, H2), dtype=jnp.bfloat16)
    outb = jax.block_until_ready(locked_dropout(xb, dropout=0.3, key=kmask))
    assert outb.shape == xb.shape and outb.dtype == xb.dtype

    print("KERNEL_OK")
</pallas_src>

<mosaic_0001>
module attributes {stable_mosaic.version = 11 : i64} {
  func.func @_locked_dropout_kernel(%arg0: i32, %arg1: i32, %arg2: memref<1x128xf32, #tpu.memory_space<vmem>>, %arg3: memref<8x128xf32, #tpu.memory_space<vmem>>, %arg4: memref<8x128xf32, #tpu.memory_space<vmem>>) attributes {dimension_semantics = [#tpu.dimension_semantics<parallel>, #tpu.dimension_semantics<parallel>], iteration_bounds = array<i64: 1, 1>, scalar_prefetch = 0 : i64, scratch_operands = 0 : i64, tpu.core_type = #tpu.core_type<tc>, window_params = [{transform_indices = @transform_0, window_bounds = array<i64: 1, 128>}, {transform_indices = @transform_1, window_bounds = array<i64: 8, 128>}, {transform_indices = @transform_2, window_bounds = array<i64: 8, 128>}]} {
    %c0 = arith.constant 0 : index
    %c0_0 = arith.constant 0 : index
    %0 = vector.load %arg3[%c0, %c0_0] : memref<8x128xf32, #tpu.memory_space<vmem>>, vector<8x128xf32>
    %c0_1 = arith.constant 0 : index
    %c0_2 = arith.constant 0 : index
    %1 = vector.load %arg2[%c0_1, %c0_2] : memref<1x128xf32, #tpu.memory_space<vmem>>, vector<1x128xf32>
    %2 = vector.broadcast %1 : vector<1x128xf32> to vector<8x128xf32>
    %3 = arith.mulf %0, %2 : vector<8x128xf32>
    %c0_3 = arith.constant 0 : index
    %c0_4 = arith.constant 0 : index
    %4 = vector.load %arg4[%c0_3, %c0_4] : memref<8x128xf32, #tpu.memory_space<vmem>>, vector<8x128xf32>
    tpu.vector_store %arg4[%c0_3, %c0_4], %3 {strides = array<i32>} : memref<8x128xf32, #tpu.memory_space<vmem>>, vector<8x128xf32>,
    return
  }
  func.func @transform_0(%arg0: i32, %arg1: i32) -> (i32, i32) {
    %c0_i32 = arith.constant 0 : i32
    %c0_i32_0 = arith.constant 0 : i32
    return %c0_i32, %arg1 : i32, i32
  }
  func.func @transform_1(%arg0: i32, %arg1: i32) -> (i32, i32) {
    %c0_i32 = arith.constant 0 : i32
    return %arg0, %arg1 : i32, i32
  }
  func.func @transform_2(%arg0: i32, %arg1: i32) -> (i32, i32) {
    %c0_i32 = arith.constant 0 : i32
    return %arg0, %arg1 : i32, i32
  }
}

</mosaic_0001>

<llo_original>
// kernel: tpu_custom_call.1
$region0: #{tpu_custom_call.1}
  #allocation0 [shape = 'u32[]', space=smem, size = 0x4, offset = 0x4, fixed_abs, tag = 'smem constant byte address 0x4 - core index']
  #allocation1 [shape = 'u32[144,128]{1,0:T(1,128)}', space=vmem, size = 0x12000, scoped, tag = 'internal scratch']
  %s0 = inlined_call_operand.hbm [shape: f32[1,128], index: 0, kind: input, shape index: {}]
  %s1 = inlined_call_operand.hbm [shape: f32[8,128], index: 1, kind: input, shape index: {}]
  %s2 = inlined_call_operand.hbm [shape: f32[8,128], index: 2, kind: output, shape index: {}]
  %s3 = sld [smem:[#allocation0]]
  $region26: #{tpu_custom_call.1} parent=0
    _
  %s5 = ssub.s32 1, %s3
  %s6 = scalar_select 0, %s5, %s3
  $region1: #{tpu_custom_call.1} parent=0
    #allocation2 [shape = 'u8[512]{0}', space=vmem, size = 0x400, scoped, tag = 'input window, operand 0, single buffered']
    #allocation3 [shape = 's32[1]{0}', space=sflag, size = 0x4, scoped, tag = 'scoped memory for tpu_custom_call.1']
    #allocation4 [shape = 's32[1]{0}', space=sflag, size = 0x4, scoped, tag = 'scoped memory for tpu_custom_call.1']
    #allocation5 [shape = 'u8[4096]{0}', space=vmem, size = 0x1000, scoped, tag = 'input window, operand 1, single buffered']
    #allocation6 [shape = 's32[1]{0}', space=sflag, size = 0x4, scoped, tag = 'scoped memory for tpu_custom_call.1']
    #allocation7 [shape = 'u8[4096]{0}', space=vmem, size = 0x1000, scoped, tag = 'output window, operand 0, single buffered']
    %7 = vsyncpa [#allocation3], 0
    %8 = vsyncpa [#allocation6], 0
    %9 = vsyncpa [#allocation4], 0
    // Predicated region
    $region2: #{tpu_custom_call.1} parent=1 // pred_check
      _
    $region3: #{tpu_custom_call.1} parent=1 // pred_check_branch
      %11 = sbr.rel (0) target = $region5
    $region4: #{tpu_custom_call.1} parent=1 // pred_region
      %s13 = ssub.s32 16, 16
      %14 = vsyncadd [#allocation3], %s13
      %s16 = sshll.u32 [#allocation2], 4
      %s17 = int_to_ptr.vmem [resolvable:$true] %s16
      %19 = dma.hbm_to_vmem [thread:$0]  %s0, 16, %s17, [#allocation3]
    $region5: #{tpu_custom_call.1} parent=1 // pred_fallthru
      _
    // Predicated region
    $region6: #{tpu_custom_call.1} parent=1 // pred_check
      _
    $region7: #{tpu_custom_call.1} parent=1 // pred_check_branch
      %21 = sbr.rel (0) target = $region9
    $region8: #{tpu_custom_call.1} parent=1 // pred_region
      %s23 = ssub.s32 128, 128
      %24 = vsyncadd [#allocation6], %s23
      %s26 = sshll.u32 [#allocation5], 4
      %s27 = int_to_ptr.vmem [resolvable:$true] %s26
      %29 = dma.hbm_to_vmem [thread:$0]  %s1, 128, %s27, [#allocation6]
    $region9: #{tpu_custom_call.1} parent=1 // pred_fallthru
      _
    // Predicated region
    $region10: #{tpu_custom_call.1} parent=1 // pred_check
      _
    $region11: #{tpu_custom_call.1} parent=1 // pred_check_branch
      %31 = sbr.rel (0) target = $region13
    $region12: #{tpu_custom_call.1} parent=1 // pred_region
      %32 = dma.done [#allocation3], 16
    $region13: #{tpu_custom_call.1} parent=1 // pred_fallthru
      _
    // Predicated region
    $region14: #{tpu_custom_call.1} parent=1 // pred_check
      _
    $region15: #{tpu_custom_call.1} parent=1 // pred_check_branch
      %34 = sbr.rel (0) target = $region17
    $region16: #{tpu_custom_call.1} parent=1 // pred_region
      %35 = dma.done [#allocation6], 128
    $region17: #{tpu_custom_call.1} parent=1 // pred_fallthru
      _
    %v36 = vld [vmem:[#allocation5] sm:$0xff]
    %v37 = vld [vmem:[#allocation2] sm:$0x1]
    %v39 = vlaneseq
    %v40 = vshrl.u32 %v39, 7
    %v41 = vsub.s32 0, %v40
    %v42 = vrot.slane %v37, %v41
    %v44 = vmul.f32 %v36, %v42
    %45 = vst [vmem:[#allocation7] sm:$0xff] %v44
    // Predicated region
    $region18: #{tpu_custom_call.1} parent=1 // pred_check
      _
    $region19: #{tpu_custom_call.1} parent=1 // pred_check_branch
      %47 = sbr.rel (0) target = $region21
    $region20: #{tpu_custom_call.1} parent=1 // pred_region
      %s49 = ssub.s32 128, 128
      %50 = vsyncadd [#allocation4], %s49
      %s52 = sshll.u32 [#allocation7], 4
      %s53 = int_to_ptr.vmem [resolvable:$true] %s52
      %55 = dma.vmem_to_hbm [thread:$0]  %s53, 128, %s2, [#allocation4]
    $region21: #{tpu_custom_call.1} parent=1 // pred_fallthru
      _
    // Predicated region
    $region22: #{tpu_custom_call.1} parent=1 // pred_check
      _
    $region23: #{tpu_custom_call.1} parent=1 // pred_check_branch
      %57 = sbr.rel (0) target = $region25
    $region24: #{tpu_custom_call.1} parent=1 // pred_region
      %58 = dma.done [#allocation4], 128
    $region25: #{tpu_custom_call.1} parent=1 // pred_fallthru
      _
    %59 = vsyncpa [#allocation3], 1
    %60 = vsyncpa [#allocation6], 1
    %61 = vsyncpa [#allocation4], 1

</llo_original>
